<compile_context>
chip_gen: v6e
topology: v6e:2x2x1
jax: 0.10.0
libtpu: 0.0.40
codegen_flags: <defaults>
</compile_context>

<pallas_src>
import jax
import jax.numpy as jnp
from jax.experimental import pallas as pl
from jax.experimental.pallas import tpu as pltpu


def _odefunc_kernel(y_ref, w1_ref, b1_ref, w2_ref, b2_ref, w3_ref, b3_ref, o_ref):
    """One batch block: y block is (3, Bt); output block is (3, Bt).

    All three layers are computed as VPU broadcast-FMAs over lane-dense
    (features, Bt) tiles; weights/biases are small VMEM-resident arrays.
    """
    y = y_ref[...].astype(jnp.float32)        # (3, Bt)
    w1 = w1_ref[...]                          # (9, 3)
    b1 = b1_ref[...]                          # (9, 1)
    w2 = w2_ref[...]                          # (9, 9)
    b2 = b2_ref[...]                          # (9, 1)
    w3 = w3_ref[...]                          # (3, 9)
    b3 = b3_ref[...]                          # (3, 1)

    def dense(w, b, x):
        # w: (out, in), b: (out, 1), x: (in, Bt) -> (out, Bt)
        out_f, in_f = w.shape
        acc = w[:, 0:1] * x[0:1, :]           # (out,1)*(1,Bt) -> (out,Bt)
        for k in range(1, in_f):              # fully unrolled: in_f is 3 or 9
            acc = acc + w[:, k:k + 1] * x[k:k + 1, :]
        return acc + b                        # (out,1) broadcasts over lanes

    h1 = jnp.maximum(dense(w1, b1, y), 0.0)   # (9, Bt)
    h2 = jnp.maximum(dense(w2, b2, h1), 0.0)  # (9, Bt)
    out = dense(w3, b3, h2)                   # (3, Bt)
    o_ref[...] = out.astype(o_ref.dtype)


def prepare_params(params):
    """One-time param prep (hoisted out of the per-call path).

    Keeps weights in their PyTorch (out, in) layout and reshapes biases to
    (out, 1) columns so they broadcast over the lane (batch) axis in-kernel.
    """
    w1, b1, w2, b2, w3, b3 = params
    return (w1, b1.reshape(-1, 1), w2, b2.reshape(-1, 1), w3, b3.reshape(-1, 1))


def odefunc_forward_fb(t, y_fb, prepared, *, block_b=512):
    """Feature-major forward: y_fb is (3, B); returns (3, B). `t` ignored."""
    del t
    w1, b1, w2, b2, w3, b3 = prepared
    f_in, batch = y_fb.shape
    f_out = w3.shape[0]

    # Lane-dense batch blocks: >=512 lanes when the batch is large; for small
    # batches a single whole-array block (full-dim block shapes are allowed).
    if batch <= block_b:
        bt = batch
        n_blocks = 1
        batch_padded = batch
    else:
        bt = block_b
        n_blocks = -(-batch // bt)
        batch_padded = n_blocks * bt

    y_in = y_fb
    if batch_padded != batch:
        y_in = jnp.pad(y_fb, ((0, 0), (0, batch_padded - batch)))

    # Constant index_map -> weights/biases DMA'd once, VMEM-resident across grid.
    resident = lambda a: pl.BlockSpec(a.shape, lambda i: (0, 0))

    out = pl.pallas_call(
        _odefunc_kernel,
        out_shape=jax.ShapeDtypeStruct((f_out, batch_padded), y_fb.dtype),
        grid=(n_blocks,),
        in_specs=[
            pl.BlockSpec((f_in, bt), lambda i: (0, i)),
            resident(w1), resident(b1),
            resident(w2), resident(b2),
            resident(w3), resident(b3),
        ],
        out_specs=pl.BlockSpec((f_out, bt), lambda i: (0, i)),
        compiler_params=pltpu.CompilerParams(
            dimension_semantics=("parallel",)),  # v7x: shard batch across 2 TCs
    )(y_in, w1, b1, w2, b2, w3, b3)

    if batch_padded != batch:
        out = out[:, :batch]
    return out


def odefunc_forward(t, y, prepared, *, block_b=512):
    """PyTorch-interface wrapper: y is (B, 3); returns (B, 3). `t` ignored."""
    out_fb = odefunc_forward_fb(t, y.T, prepared, block_b=block_b)
    return out_fb.T


def init_params(key):
    """Matches the PyTorch init: weights ~ N(0, 0.1), biases = 0.
    Weight shapes are (out, in), like nn.Linear."""
    k1, k2, k3 = jax.random.split(key, 3)
    w1 = 0.1 * jax.random.normal(k1, (9, 3), dtype=jnp.float32)
    b1 = jnp.zeros((9,), dtype=jnp.float32)
    w2 = 0.1 * jax.random.normal(k2, (9, 9), dtype=jnp.float32)
    b2 = jnp.zeros((9,), dtype=jnp.float32)
    w3 = 0.1 * jax.random.normal(k3, (3, 9), dtype=jnp.float32)
    b3 = jnp.zeros((3,), dtype=jnp.float32)
    return (w1, b1, w2, b2, w3, b3)


def reference_forward(t, y, params):
    """Pure-JAX reference (same math as the PyTorch nn.Sequential)."""
    del t
    w1, b1, w2, b2, w3, b3 = params
    h = jnp.maximum(y @ w1.T + b1, 0.0)
    h = jnp.maximum(h @ w2.T + b2, 0.0)
    return h @ w3.T + b3


if __name__ == "__main__":
    key = jax.random.PRNGKey(0)
    pkey, ykey = jax.random.split(key)
    params = init_params(pkey)
    prepared = prepare_params(params)  # hoisted: done once, not per forward

    t = jnp.float32(0.0)  # unused, as in the PyTorch module

    # Small batch (single-block path), PyTorch-compatible (B, 3) interface.
    B = 8
    y = jax.random.normal(ykey, (B, 3), dtype=jnp.float32)
    out = jax.block_until_ready(odefunc_forward(t, y, prepared))
    ref = reference_forward(t, y, params)
    assert out.shape == (B, 3), out.shape
    assert jnp.allclose(out, ref, atol=1e-5, rtol=1e-5), "mismatch vs reference (small batch)"

    # Larger batch: exercises the multi-block grid + padding path.
    B2 = 1100
    y2 = jax.random.normal(jax.random.PRNGKey(1), (B2, 3), dtype=jnp.float32)
    out2 = jax.block_until_ready(odefunc_forward(t, y2, prepared))
    ref2 = reference_forward(t, y2, params)
    assert out2.shape == (B2, 3), out2.shape
    assert jnp.allclose(out2, ref2, atol=1e-5, rtol=1e-5), "mismatch vs reference (large batch)"

    print("KERNEL_OK")
</pallas_src>

<mosaic_0001>
module attributes {stable_mosaic.version = 11 : i64} {
  func.func @_odefunc_kernel(%arg0: i32, %arg1: memref<3x8xf32, #tpu.memory_space<vmem>>, %arg2: memref<9x3xf32, #tpu.memory_space<vmem>>, %arg3: memref<9x1xf32, #tpu.memory_space<vmem>>, %arg4: memref<9x9xf32, #tpu.memory_space<vmem>>, %arg5: memref<9x1xf32, #tpu.memory_space<vmem>>, %arg6: memref<3x9xf32, #tpu.memory_space<vmem>>, %arg7: memref<3x1xf32, #tpu.memory_space<vmem>>, %arg8: memref<3x8xf32, #tpu.memory_space<vmem>>) attributes {dimension_semantics = [#tpu.dimension_semantics<parallel>], iteration_bounds = array<i64: 1>, scalar_prefetch = 0 : i64, scratch_operands = 0 : i64, tpu.core_type = #tpu.core_type<tc>, window_params = [{transform_indices = @transform_0, window_bounds = array<i64: 3, 8>}, {pipeline_mode = #tpu.pipeline_mode<synchronous>, transform_indices = @transform_1, window_bounds = array<i64: 9, 3>}, {pipeline_mode = #tpu.pipeline_mode<synchronous>, transform_indices = @transform_2, window_bounds = array<i64: 9, 1>}, {pipeline_mode = #tpu.pipeline_mode<synchronous>, transform_indices = @transform_3, window_bounds = array<i64: 9, 9>}, {pipeline_mode = #tpu.pipeline_mode<synchronous>, transform_indices = @transform_4, window_bounds = array<i64: 9, 1>}, {pipeline_mode = #tpu.pipeline_mode<synchronous>, transform_indices = @transform_5, window_bounds = array<i64: 3, 9>}, {pipeline_mode = #tpu.pipeline_mode<synchronous>, transform_indices = @transform_6, window_bounds = array<i64: 3, 1>}, {transform_indices = @transform_7, window_bounds = array<i64: 3, 8>}]} {
    %c0 = arith.constant 0 : index
    %c0_0 = arith.constant 0 : index
    %0 = vector.load %arg1[%c0, %c0_0] : memref<3x8xf32, #tpu.memory_space<vmem>>, vector<3x8xf32>
    %c0_1 = arith.constant 0 : index
    %c0_2 = arith.constant 0 : index
    %1 = vector.load %arg2[%c0_1, %c0_2] : memref<9x3xf32, #tpu.memory_space<vmem>>, vector<9x3xf32>
    %c0_3 = arith.constant 0 : index
    %c0_4 = arith.constant 0 : index
    %2 = vector.load %arg3[%c0_3, %c0_4] : memref<9x1xf32, #tpu.memory_space<vmem>>, vector<9x1xf32>
    %c0_5 = arith.constant 0 : index
    %c0_6 = arith.constant 0 : index
    %3 = vector.load %arg4[%c0_5, %c0_6] : memref<9x9xf32, #tpu.memory_space<vmem>>, vector<9x9xf32>
    %c0_7 = arith.constant 0 : index
    %c0_8 = arith.constant 0 : index
    %4 = vector.load %arg5[%c0_7, %c0_8] : memref<9x1xf32, #tpu.memory_space<vmem>>, vector<9x1xf32>
    %c0_9 = arith.constant 0 : index
    %c0_10 = arith.constant 0 : index
    %5 = vector.load %arg6[%c0_9, %c0_10] : memref<3x9xf32, #tpu.memory_space<vmem>>, vector<3x9xf32>
    %c0_11 = arith.constant 0 : index
    %c0_12 = arith.constant 0 : index
    %6 = vector.load %arg7[%c0_11, %c0_12] : memref<3x1xf32, #tpu.memory_space<vmem>>, vector<3x1xf32>
    %7 = vector.extract_strided_slice %1 {offsets = [0, 0], sizes = [9, 1], strides = [1, 1]} : vector<9x3xf32> to vector<9x1xf32>
    %8 = vector.extract_strided_slice %0 {offsets = [0, 0], sizes = [1, 8], strides = [1, 1]} : vector<3x8xf32> to vector<1x8xf32>
    %9 = vector.broadcast %7 : vector<9x1xf32> to vector<9x8xf32>
    %10 = vector.broadcast %8 : vector<1x8xf32> to vector<9x8xf32>
    %11 = arith.mulf %9, %10 : vector<9x8xf32>
    %12 = vector.extract_strided_slice %1 {offsets = [0, 1], sizes = [9, 1], strides = [1, 1]} : vector<9x3xf32> to vector<9x1xf32>
    %13 = vector.extract_strided_slice %0 {offsets = [1, 0], sizes = [1, 8], strides = [1, 1]} : vector<3x8xf32> to vector<1x8xf32>
    %14 = vector.broadcast %12 : vector<9x1xf32> to vector<9x8xf32>
    %15 = vector.broadcast %13 : vector<1x8xf32> to vector<9x8xf32>
    %16 = arith.mulf %14, %15 : vector<9x8xf32>
    %17 = arith.addf %11, %16 : vector<9x8xf32>
    %18 = vector.extract_strided_slice %1 {offsets = [0, 2], sizes = [9, 1], strides = [1, 1]} : vector<9x3xf32> to vector<9x1xf32>
    %19 = vector.extract_strided_slice %0 {offsets = [2, 0], sizes = [1, 8], strides = [1, 1]} : vector<3x8xf32> to vector<1x8xf32>
    %20 = vector.broadcast %18 : vector<9x1xf32> to vector<9x8xf32>
    %21 = vector.broadcast %19 : vector<1x8xf32> to vector<9x8xf32>
    %22 = arith.mulf %20, %21 : vector<9x8xf32>
    %23 = arith.addf %17, %22 : vector<9x8xf32>
    %24 = vector.broadcast %2 : vector<9x1xf32> to vector<9x8xf32>
    %25 = arith.addf %23, %24 : vector<9x8xf32>
    %cst = arith.constant 0.000000e+00 : f32
    %26 = vector.broadcast %cst : f32 to vector<9x8xf32>
    %27 = arith.maximumf %25, %26 : vector<9x8xf32>
    %28 = vector.extract_strided_slice %3 {offsets = [0, 0], sizes = [9, 1], strides = [1, 1]} : vector<9x9xf32> to vector<9x1xf32>
    %29 = vector.extract_strided_slice %27 {offsets = [0, 0], sizes = [1, 8], strides = [1, 1]} : vector<9x8xf32> to vector<1x8xf32>
    %30 = vector.broadcast %28 : vector<9x1xf32> to vector<9x8xf32>
    %31 = vector.broadcast %29 : vector<1x8xf32> to vector<9x8xf32>
    %32 = arith.mulf %30, %31 : vector<9x8xf32>
    %33 = vector.extract_strided_slice %3 {offsets = [0, 1], sizes = [9, 1], strides = [1, 1]} : vector<9x9xf32> to vector<9x1xf32>
    %34 = vector.extract_strided_slice %27 {offsets = [1, 0], sizes = [1, 8], strides = [1, 1]} : vector<9x8xf32> to vector<1x8xf32>
    %35 = vector.broadcast %33 : vector<9x1xf32> to vector<9x8xf32>
    %36 = vector.broadcast %34 : vector<1x8xf32> to vector<9x8xf32>
    %37 = arith.mulf %35, %36 : vector<9x8xf32>
    %38 = arith.addf %32, %37 : vector<9x8xf32>
    %39 = vector.extract_strided_slice %3 {offsets = [0, 2], sizes = [9, 1], strides = [1, 1]} : vector<9x9xf32> to vector<9x1xf32>
    %40 = vector.extract_strided_slice %27 {offsets = [2, 0], sizes = [1, 8], strides = [1, 1]} : vector<9x8xf32> to vector<1x8xf32>
    %41 = vector.broadcast %39 : vector<9x1xf32> to vector<9x8xf32>
    %42 = vector.broadcast %40 : vector<1x8xf32> to vector<9x8xf32>
    %43 = arith.mulf %41, %42 : vector<9x8xf32>
    %44 = arith.addf %38, %43 : vector<9x8xf32>
    %45 = vector.extract_strided_slice %3 {offsets = [0, 3], sizes = [9, 1], strides = [1, 1]} : vector<9x9xf32> to vector<9x1xf32>
    %46 = vector.extract_strided_slice %27 {offsets = [3, 0], sizes = [1, 8], strides = [1, 1]} : vector<9x8xf32> to vector<1x8xf32>
    %47 = vector.broadcast %45 : vector<9x1xf32> to vector<9x8xf32>
    %48 = vector.broadcast %46 : vector<1x8xf32> to vector<9x8xf32>
    %49 = arith.mulf %47, %48 : vector<9x8xf32>
    %50 = arith.addf %44, %49 : vector<9x8xf32>
    %51 = vector.extract_strided_slice %3 {offsets = [0, 4], sizes = [9, 1], strides = [1, 1]} : vector<9x9xf32> to vector<9x1xf32>
    %52 = vector.extract_strided_slice %27 {offsets = [4, 0], sizes = [1, 8], strides = [1, 1]} : vector<9x8xf32> to vector<1x8xf32>
    %53 = vector.broadcast %51 : vector<9x1xf32> to vector<9x8xf32>
    %54 = vector.broadcast %52 : vector<1x8xf32> to vector<9x8xf32>
    %55 = arith.mulf %53, %54 : vector<9x8xf32>
    %56 = arith.addf %50, %55 : vector<9x8xf32>
    %57 = vector.extract_strided_slice %3 {offsets = [0, 5], sizes = [9, 1], strides = [1, 1]} : vector<9x9xf32> to vector<9x1xf32>
    %58 = vector.extract_strided_slice %27 {offsets = [5, 0], sizes = [1, 8], strides = [1, 1]} : vector<9x8xf32> to vector<1x8xf32>
    %59 = vector.broadcast %57 : vector<9x1xf32> to vector<9x8xf32>
    %60 = vector.broadcast %58 : vector<1x8xf32> to vector<9x8xf32>
    %61 = arith.mulf %59, %60 : vector<9x8xf32>
    %62 = arith.addf %56, %61 : vector<9x8xf32>
    %63 = vector.extract_strided_slice %3 {offsets = [0, 6], sizes = [9, 1], strides = [1, 1]} : vector<9x9xf32> to vector<9x1xf32>
    %64 = vector.extract_strided_slice %27 {offsets = [6, 0], sizes = [1, 8], strides = [1, 1]} : vector<9x8xf32> to vector<1x8xf32>
    %65 = vector.broadcast %63 : vector<9x1xf32> to vector<9x8xf32>
    %66 = vector.broadcast %64 : vector<1x8xf32> to vector<9x8xf32>
    %67 = arith.mulf %65, %66 : vector<9x8xf32>
    %68 = arith.addf %62, %67 : vector<9x8xf32>
    %69 = vector.extract_strided_slice %3 {offsets = [0, 7], sizes = [9, 1], strides = [1, 1]} : vector<9x9xf32> to vector<9x1xf32>
    %70 = vector.extract_strided_slice %27 {offsets = [7, 0], sizes = [1, 8], strides = [1, 1]} : vector<9x8xf32> to vector<1x8xf32>
    %71 = vector.broadcast %69 : vector<9x1xf32> to vector<9x8xf32>
    %72 = vector.broadcast %70 : vector<1x8xf32> to vector<9x8xf32>
    %73 = arith.mulf %71, %72 : vector<9x8xf32>
    %74 = arith.addf %68, %73 : vector<9x8xf32>
    %75 = vector.extract_strided_slice %3 {offsets = [0, 8], sizes = [9, 1], strides = [1, 1]} : vector<9x9xf32> to vector<9x1xf32>
    %76 = vector.extract_strided_slice %27 {offsets = [8, 0], sizes = [1, 8], strides = [1, 1]} : vector<9x8xf32> to vector<1x8xf32>
    %77 = vector.broadcast %75 : vector<9x1xf32> to vector<9x8xf32>
    %78 = vector.broadcast %76 : vector<1x8xf32> to vector<9x8xf32>
    %79 = arith.mulf %77, %78 : vector<9x8xf32>
    %80 = arith.addf %74, %79 : vector<9x8xf32>
    %81 = vector.broadcast %4 : vector<9x1xf32> to vector<9x8xf32>
    %82 = arith.addf %80, %81 : vector<9x8xf32>
    %cst_13 = arith.constant 0.000000e+00 : f32
    %83 = vector.broadcast %cst_13 : f32 to vector<9x8xf32>
    %84 = arith.maximumf %82, %83 : vector<9x8xf32>
    %85 = vector.extract_strided_slice %5 {offsets = [0, 0], sizes = [3, 1], strides = [1, 1]} : vector<3x9xf32> to vector<3x1xf32>
    %86 = vector.extract_strided_slice %84 {offsets = [0, 0], sizes = [1, 8], strides = [1, 1]} : vector<9x8xf32> to vector<1x8xf32>
    %87 = vector.broadcast %85 : vector<3x1xf32> to vector<3x8xf32>
    %88 = vector.broadcast %86 : vector<1x8xf32> to vector<3x8xf32>
    %89 = arith.mulf %87, %88 : vector<3x8xf32>
    %90 = vector.extract_strided_slice %5 {offsets = [0, 1], sizes = [3, 1], strides = [1, 1]} : vector<3x9xf32> to vector<3x1xf32>
    %91 = vector.extract_strided_slice %84 {offsets = [1, 0], sizes = [1, 8], strides = [1, 1]} : vector<9x8xf32> to vector<1x8xf32>
    %92 = vector.broadcast %90 : vector<3x1xf32> to vector<3x8xf32>
    %93 = vector.broadcast %91 : vector<1x8xf32> to vector<3x8xf32>
    %94 = arith.mulf %92, %93 : vector<3x8xf32>
    %95 = arith.addf %89, %94 : vector<3x8xf32>
    %96 = vector.extract_strided_slice %5 {offsets = [0, 2], sizes = [3, 1], strides = [1, 1]} : vector<3x9xf32> to vector<3x1xf32>
    %97 = vector.extract_strided_slice %84 {offsets = [2, 0], sizes = [1, 8], strides = [1, 1]} : vector<9x8xf32> to vector<1x8xf32>
    %98 = vector.broadcast %96 : vector<3x1xf32> to vector<3x8xf32>
    %99 = vector.broadcast %97 : vector<1x8xf32> to vector<3x8xf32>
    %100 = arith.mulf %98, %99 : vector<3x8xf32>
    %101 = arith.addf %95, %100 : vector<3x8xf32>
    %102 = vector.extract_strided_slice %5 {offsets = [0, 3], sizes = [3, 1], strides = [1, 1]} : vector<3x9xf32> to vector<3x1xf32>
    %103 = vector.extract_strided_slice %84 {offsets = [3, 0], sizes = [1, 8], strides = [1, 1]} : vector<9x8xf32> to vector<1x8xf32>
    %104 = vector.broadcast %102 : vector<3x1xf32> to vector<3x8xf32>
    %105 = vector.broadcast %103 : vector<1x8xf32> to vector<3x8xf32>
    %106 = arith.mulf %104, %105 : vector<3x8xf32>
    %107 = arith.addf %101, %106 : vector<3x8xf32>
    %108 = vector.extract_strided_slice %5 {offsets = [0, 4], sizes = [3, 1], strides = [1, 1]} : vector<3x9xf32> to vector<3x1xf32>
    %109 = vector.extract_strided_slice %84 {offsets = [4, 0], sizes = [1, 8], strides = [1, 1]} : vector<9x8xf32> to vector<1x8xf32>
    %110 = vector.broadcast %108 : vector<3x1xf32> to vector<3x8xf32>
    %111 = vector.broadcast %109 : vector<1x8xf32> to vector<3x8xf32>
    %112 = arith.mulf %110, %111 : vector<3x8xf32>
    %113 = arith.addf %107, %112 : vector<3x8xf32>
    %114 = vector.extract_strided_slice %5 {offsets = [0, 5], sizes = [3, 1], strides = [1, 1]} : vector<3x9xf32> to vector<3x1xf32>
    %115 = vector.extract_strided_slice %84 {offsets = [5, 0], sizes = [1, 8], strides = [1, 1]} : vector<9x8xf32> to vector<1x8xf32>
    %116 = vector.broadcast %114 : vector<3x1xf32> to vector<3x8xf32>
    %117 = vector.broadcast %115 : vector<1x8xf32> to vector<3x8xf32>
    %118 = arith.mulf %116, %117 : vector<3x8xf32>
    %119 = arith.addf %113, %118 : vector<3x8xf32>
    %120 = vector.extract_strided_slice %5 {offsets = [0, 6], sizes = [3, 1], strides = [1, 1]} : vector<3x9xf32> to vector<3x1xf32>
    %121 = vector.extract_strided_slice %84 {offsets = [6, 0], sizes = [1, 8], strides = [1, 1]} : vector<9x8xf32> to vector<1x8xf32>
    %122 = vector.broadcast %120 : vector<3x1xf32> to vector<3x8xf32>
    %123 = vector.broadcast %121 : vector<1x8xf32> to vector<3x8xf32>
    %124 = arith.mulf %122, %123 : vector<3x8xf32>
    %125 = arith.addf %119, %124 : vector<3x8xf32>
    %126 = vector.extract_strided_slice %5 {offsets = [0, 7], sizes = [3, 1], strides = [1, 1]} : vector<3x9xf32> to vector<3x1xf32>
    %127 = vector.extract_strided_slice %84 {offsets = [7, 0], sizes = [1, 8], strides = [1, 1]} : vector<9x8xf32> to vector<1x8xf32>
    %128 = vector.broadcast %126 : vector<3x1xf32> to vector<3x8xf32>
    %129 = vector.broadcast %127 : vector<1x8xf32> to vector<3x8xf32>
    %130 = arith.mulf %128, %129 : vector<3x8xf32>
    %131 = arith.addf %125, %130 : vector<3x8xf32>
    %132 = vector.extract_strided_slice %5 {offsets = [0, 8], sizes = [3, 1], strides = [1, 1]} : vector<3x9xf32> to vector<3x1xf32>
    %133 = vector.extract_strided_slice %84 {offsets = [8, 0], sizes = [1, 8], strides = [1, 1]} : vector<9x8xf32> to vector<1x8xf32>
    %134 = vector.broadcast %132 : vector<3x1xf32> to vector<3x8xf32>
    %135 = vector.broadcast %133 : vector<1x8xf32> to vector<3x8xf32>
    %136 = arith.mulf %134, %135 : vector<3x8xf32>
    %137 = arith.addf %131, %136 : vector<3x8xf32>
    %138 = vector.broadcast %6 : vector<3x1xf32> to vector<3x8xf32>
    %139 = arith.addf %137, %138 : vector<3x8xf32>
    %c0_14 = arith.constant 0 : index
    %c0_15 = arith.constant 0 : index
    %140 = vector.load %arg8[%c0_14, %c0_15] : memref<3x8xf32, #tpu.memory_space<vmem>>, vector<3x8xf32>
    tpu.vector_store %arg8[%c0_14, %c0_15], %139 {strides = array<i32>} : memref<3x8xf32, #tpu.memory_space<vmem>>, vector<3x8xf32>,
    return
  }
  func.func @transform_0(%arg0: i32) -> (i32, i32) {
    %c0_i32 = arith.constant 0 : i32
    %c0_i32_0 = arith.constant 0 : i32
    return %c0_i32, %arg0 : i32, i32
  }
  func.func @transform_1(%arg0: i32) -> (i32, i32) {
    %c0_i32 = arith.constant 0 : i32
    %c0_i32_0 = arith.constant 0 : i32
    %c0_i32_1 = arith.constant 0 : i32
    return %c0_i32, %c0_i32_0 : i32, i32
  }
  func.func @transform_2(%arg0: i32) -> (i32, i32) {
    %c0_i32 = arith.constant 0 : i32
    %c0_i32_0 = arith.constant 0 : i32
    %c0_i32_1 = arith.constant 0 : i32
    return %c0_i32, %c0_i32_0 : i32, i32
  }
  func.func @transform_3(%arg0: i32) -> (i32, i32) {
    %c0_i32 = arith.constant 0 : i32
    %c0_i32_0 = arith.constant 0 : i32
    %c0_i32_1 = arith.constant 0 : i32
    return %c0_i32, %c0_i32_0 : i32, i32
  }
  func.func @transform_4(%arg0: i32) -> (i32, i32) {
    %c0_i32 = arith.constant 0 : i32
    %c0_i32_0 = arith.constant 0 : i32
    %c0_i32_1 = arith.constant 0 : i32
    return %c0_i32, %c0_i32_0 : i32, i32
  }
  func.func @transform_5(%arg0: i32) -> (i32, i32) {
    %c0_i32 = arith.constant 0 : i32
    %c0_i32_0 = arith.constant 0 : i32
    %c0_i32_1 = arith.constant 0 : i32
    return %c0_i32, %c0_i32_0 : i32, i32
  }
  func.func @transform_6(%arg0: i32) -> (i32, i32) {
    %c0_i32 = arith.constant 0 : i32
    %c0_i32_0 = arith.constant 0 : i32
    %c0_i32_1 = arith.constant 0 : i32
    return %c0_i32, %c0_i32_0 : i32, i32
  }
  func.func @transform_7(%arg0: i32) -> (i32, i32) {
    %c0_i32 = arith.constant 0 : i32
    %c0_i32_0 = arith.constant 0 : i32
    return %c0_i32, %arg0 : i32, i32
  }
}

</mosaic_0001>

<llo_original>
// kernel: tpu_custom_call.1
$region0: #{tpu_custom_call.1}
  #allocation0 [shape = 'u32[]', space=smem, size = 0x4, offset = 0x4, fixed_abs, tag = 'smem constant byte address 0x4 - core index']
  #allocation1 [shape = 'u32[144,128]{1,0:T(1,128)}', space=vmem, size = 0x12000, scoped, tag = 'internal scratch']
  %s0 = inlined_call_operand.vmem [shape: f32[3,8], index: 0, kind: input, shape index: {}]
  %s1 = inlined_call_operand.vmem [shape: f32[9,3], index: 1, kind: input, shape index: {}]
  %s2 = inlined_call_operand.vmem [shape: f32[9,1], index: 2, kind: input, shape index: {}]
  %s3 = inlined_call_operand.vmem [shape: f32[9,9], index: 3, kind: input, shape index: {}]
  %s4 = inlined_call_operand.vmem [shape: f32[9,1], index: 4, kind: input, shape index: {}]
  %s5 = inlined_call_operand.vmem [shape: f32[3,9], index: 5, kind: input, shape index: {}]
  %s6 = inlined_call_operand.vmem [shape: f32[3,1], index: 6, kind: input, shape index: {}]
  %s7 = inlined_call_operand.hbm [shape: f32[3,8], index: 7, kind: output, shape index: {}]
  %s8 = sld [smem:[#allocation0]]
  $region38: #{tpu_custom_call.1} parent=0
    _
  %s10 = ssub.s32 1, %s8
  %s11 = scalar_select 0, %s10, %s8
  $region1: #{tpu_custom_call.1} parent=0
    #allocation2 [shape = 'u8[2048]{0}', space=vmem, size = 0x800, scoped, tag = 'output window, operand 0, single buffered']
    #allocation3 [shape = 's32[1]{0}', space=sflag, size = 0x4, scoped, tag = 'scoped memory for tpu_custom_call.1']
    %12 = vsyncpa [#allocation3], 0
    // Predicated region
    $region2: #{tpu_custom_call.1} parent=1 // pred_check
      _
    $region3: #{tpu_custom_call.1} parent=1 // pred_check_branch
      %14 = sbr.rel (0) target = $region5
    $region4: #{tpu_custom_call.1} parent=1 // pred_region
      _
    $region5: #{tpu_custom_call.1} parent=1 // pred_fallthru
      _
    // Predicated region
    $region6: #{tpu_custom_call.1} parent=1 // pred_check
      _
    $region7: #{tpu_custom_call.1} parent=1 // pred_check_branch
      %16 = sbr.rel (0) target = $region9
    $region8: #{tpu_custom_call.1} parent=1 // pred_region
      _
    $region9: #{tpu_custom_call.1} parent=1 // pred_fallthru
      _
    // Predicated region
    $region10: #{tpu_custom_call.1} parent=1 // pred_check
      _
    $region11: #{tpu_custom_call.1} parent=1 // pred_check_branch
      %18 = sbr.rel (0) target = $region13
    $region12: #{tpu_custom_call.1} parent=1 // pred_region
      _
    $region13: #{tpu_custom_call.1} parent=1 // pred_fallthru
      _
    // Predicated region
    $region14: #{tpu_custom_call.1} parent=1 // pred_check
      _
    $region15: #{tpu_custom_call.1} parent=1 // pred_check_branch
      %20 = sbr.rel (0) target = $region17
    $region16: #{tpu_custom_call.1} parent=1 // pred_region
      _
    $region17: #{tpu_custom_call.1} parent=1 // pred_fallthru
      _
    // Predicated region
    $region18: #{tpu_custom_call.1} parent=1 // pred_check
      _
    $region19: #{tpu_custom_call.1} parent=1 // pred_check_branch
      %22 = sbr.rel (0) target = $region21
    $region20: #{tpu_custom_call.1} parent=1 // pred_region
      _
    $region21: #{tpu_custom_call.1} parent=1 // pred_fallthru
      _
    // Predicated region
    $region22: #{tpu_custom_call.1} parent=1 // pred_check
      _
    $region23: #{tpu_custom_call.1} parent=1 // pred_check_branch
      %24 = sbr.rel (0) target = $region25
    $region24: #{tpu_custom_call.1} parent=1 // pred_region
      _
    $region25: #{tpu_custom_call.1} parent=1 // pred_fallthru
      _
    // Predicated region
    $region26: #{tpu_custom_call.1} parent=1 // pred_check
      _
    $region27: #{tpu_custom_call.1} parent=1 // pred_check_branch
      %26 = sbr.rel (0) target = $region29
    $region28: #{tpu_custom_call.1} parent=1 // pred_region
      _
    $region29: #{tpu_custom_call.1} parent=1 // pred_fallthru
      _
    %v27 = vld [vmem:[%s0] sm:$0x7]
    %v28 = vld [vmem:[%s1] sm:$0xff]
    %v29 = vld [vmem:[%s1 + $0x8] sm:$0x1]
    %v30 = vld [vmem:[%s2] sm:$0xff]
    %v31 = vld [vmem:[%s2 + $0x8] sm:$0x1]
    %v32 = vld [vmem:[%s3] sm:$0xff]
    %v33 = vld [vmem:[%s3 + $0x8] sm:$0x1]
    %v34 = vld [vmem:[%s4] sm:$0xff]
    %v35 = vld [vmem:[%s4 + $0x8] sm:$0x1]
    %v36 = vld [vmem:[%s5] sm:$0x7]
    %v37 = vld [vmem:[%s6] sm:$0x7]
    %39 = vset.pattern.permute.xlu0 0
    %40 = vperm.xlu0 %39, %v28
    %v41 = vpop.permute.xlu0 %40
    %44 = vset.pattern.permute.xlu0 0
    %45 = vperm.xlu0 %44, %v29
    %v46 = vpop.permute.xlu0 %45
    %v48 = vlaneseq
    %v49 = vshrl.u32 %v48, 7
    %v50 = vsub.s32 0, %v49
    %v51 = vrot.slane %v27, %v50
    %v52 = vmul.f32 %v41, %v51
    %v53 = vmul.f32 %v46, %v51
    %54 = vset.pattern.permute.xlu0 1
    %55 = vperm.xlu0 %54, %v28
    %v56 = vpop.permute.xlu0 %55
    %58 = vset.pattern.permute.xlu0 1
    %59 = vperm.xlu0 %58, %v29
    %v60 = vpop.permute.xlu0 %59
    %v62 = vlaneseq
    %v63 = vshrl.u32 %v62, 7
    %v64 = vsub.s32 1, %v63
    %v65 = vrot.slane %v27, %v64
    %v66 = vmul.f32 %v56, %v65
    %v67 = vmul.f32 %v60, %v65
    %v68 = vadd.f32 %v52, %v66
    %v69 = vadd.f32 %v53, %v67
    %70 = vset.pattern.permute.xlu0 2
    %71 = vperm.xlu0 %70, %v28
    %v72 = vpop.permute.xlu0 %71
    %74 = vset.pattern.permute.xlu0 2
    %75 = vperm.xlu0 %74, %v29
    %v76 = vpop.permute.xlu0 %75
    %v78 = vlaneseq
    %v79 = vshrl.u32 %v78, 7
    %v80 = vsub.s32 2, %v79
    %v81 = vrot.slane %v27, %v80
    %v82 = vmul.f32 %v72, %v81
    %v83 = vmul.f32 %v76, %v81
    %v84 = vadd.f32 %v68, %v82
    %v85 = vadd.f32 %v69, %v83
    %87 = vset.pattern.permute.xlu0 0
    %88 = vperm.xlu0 %87, %v30
    %v89 = vpop.permute.xlu0 %88
    %92 = vset.pattern.permute.xlu0 0
    %93 = vperm.xlu0 %92, %v31
    %v94 = vpop.permute.xlu0 %93
    %v96 = vadd.f32 %v84, %v89
    %v97 = vadd.f32 %v85, %v94
    %v98 = vmax.f32 %v96, 0.0
    %v99 = vmax.f32 %v97, 0.0
    %101 = vset.pattern.permute.xlu0 0
    %102 = vperm.xlu0 %101, %v32
    %v103 = vpop.permute.xlu0 %102
    %106 = vset.pattern.permute.xlu0 0
    %107 = vperm.xlu0 %106, %v33
    %v108 = vpop.permute.xlu0 %107
    %v110 = vlaneseq
    %v111 = vshrl.u32 %v110, 7
    %v112 = vsub.s32 0, %v111
    %v113 = vrot.slane %v98, %v112
    %v114 = vmul.f32 %v103, %v113
    %v115 = vmul.f32 %v108, %v113
    %116 = vset.pattern.permute.xlu0 1
    %117 = vperm.xlu0 %116, %v32
    %v118 = vpop.permute.xlu0 %117
    %120 = vset.pattern.permute.xlu0 1
    %121 = vperm.xlu0 %120, %v33
    %v122 = vpop.permute.xlu0 %121
    %v124 = vlaneseq
    %v125 = vshrl.u32 %v124, 7
    %v126 = vsub.s32 1, %v125
    %v127 = vrot.slane %v98, %v126
    %v128 = vmul.f32 %v118, %v127
    %v129 = vmul.f32 %v122, %v127
    %v130 = vadd.f32 %v114, %v128
    %v131 = vadd.f32 %v115, %v129
    %132 = vset.pattern.permute.xlu0 2
    %133 = vperm.xlu0 %132, %v32
    %v134 = vpop.permute.xlu0 %133
    %136 = vset.pattern.permute.xlu0 2
    %137 = vperm.xlu0 %136, %v33
    %v138 = vpop.permute.xlu0 %137
    %v140 = vlaneseq
    %v141 = vshrl.u32 %v140, 7
    %v142 = vsub.s32 2, %v141
    %v143 = vrot.slane %v98, %v142
    %v144 = vmul.f32 %v134, %v143
    %v145 = vmul.f32 %v138, %v143
    %v146 = vadd.f32 %v130, %v144
    %v147 = vadd.f32 %v131, %v145
    %148 = vset.pattern.permute.xlu0 3
    %149 = vperm.xlu0 %148, %v32
    %v150 = vpop.permute.xlu0 %149
    %152 = vset.pattern.permute.xlu0 3
    %153 = vperm.xlu0 %152, %v33
    %v154 = vpop.permute.xlu0 %153
    %v156 = vlaneseq
    %v157 = vshrl.u32 %v156, 7
    %v158 = vsub.s32 3, %v157
    %v159 = vrot.slane %v98, %v158
    %v160 = vmul.f32 %v150, %v159
    %v161 = vmul.f32 %v154, %v159
    %v162 = vadd.f32 %v146, %v160
    %v163 = vadd.f32 %v147, %v161
    %164 = vset.pattern.permute.xlu0 4
    %165 = vperm.xlu0 %164, %v32
    %v166 = vpop.permute.xlu0 %165
    %168 = vset.pattern.permute.xlu0 4
    %169 = vperm.xlu0 %168, %v33
    %v170 = vpop.permute.xlu0 %169
    %v172 = vlaneseq
    %v173 = vshrl.u32 %v172, 7
    %v174 = vsub.s32 4, %v173
    %v175 = vrot.slane %v98, %v174
    %v176 = vmul.f32 %v166, %v175
    %v177 = vmul.f32 %v170, %v175
    %v178 = vadd.f32 %v162, %v176
    %v179 = vadd.f32 %v163, %v177
    %180 = vset.pattern.permute.xlu0 5
    %181 = vperm.xlu0 %180, %v32
    %v182 = vpop.permute.xlu0 %181
    %184 = vset.pattern.permute.xlu0 5
    %185 = vperm.xlu0 %184, %v33
    %v186 = vpop.permute.xlu0 %185
    %v188 = vlaneseq
    %v189 = vshrl.u32 %v188, 7
    %v190 = vsub.s32 5, %v189
    %v191 = vrot.slane %v98, %v190
    %v192 = vmul.f32 %v182, %v191
    %v193 = vmul.f32 %v186, %v191
    %v194 = vadd.f32 %v178, %v192
    %v195 = vadd.f32 %v179, %v193
    %196 = vset.pattern.permute.xlu0 6
    %197 = vperm.xlu0 %196, %v32
    %v198 = vpop.permute.xlu0 %197
    %200 = vset.pattern.permute.xlu0 6
    %201 = vperm.xlu0 %200, %v33
    %v202 = vpop.permute.xlu0 %201
    %v204 = vlaneseq
    %v205 = vshrl.u32 %v204, 7
    %v206 = vsub.s32 6, %v205
    %v207 = vrot.slane %v98, %v206
    %v208 = vmul.f32 %v198, %v207
    %v209 = vmul.f32 %v202, %v207
    %v210 = vadd.f32 %v194, %v208
    %v211 = vadd.f32 %v195, %v209
    %212 = vset.pattern.permute.xlu0 7
    %213 = vperm.xlu0 %212, %v32
    %v214 = vpop.permute.xlu0 %213
    %216 = vset.pattern.permute.xlu0 7
    %217 = vperm.xlu0 %216, %v33
    %v218 = vpop.permute.xlu0 %217
    %v220 = vlaneseq
    %v221 = vshrl.u32 %v220, 7
    %v222 = vsub.s32 7, %v221
    %v223 = vrot.slane %v98, %v222
    %v224 = vmul.f32 %v214, %v223
    %v225 = vmul.f32 %v218, %v223
    %v226 = vadd.f32 %v210, %v224
    %v227 = vadd.f32 %v211, %v225
    %228 = vset.pattern.permute.xlu0 8
    %229 = vperm.xlu0 %228, %v32
    %v230 = vpop.permute.xlu0 %229
    %232 = vset.pattern.permute.xlu0 8
    %233 = vperm.xlu0 %232, %v33
    %v234 = vpop.permute.xlu0 %233
    %v236 = vlaneseq
    %v237 = vshrl.u32 %v236, 7
    %v238 = vsub.s32 0, %v237
    %v239 = vrot.slane %v99, %v238
    %v240 = vmul.f32 %v230, %v239
    %v241 = vmul.f32 %v234, %v239
    %v242 = vadd.f32 %v226, %v240
    %v243 = vadd.f32 %v227, %v241
    %245 = vset.pattern.permute.xlu0 0
    %246 = vperm.xlu0 %245, %v34
    %v247 = vpop.permute.xlu0 %246
    %250 = vset.pattern.permute.xlu0 0
    %251 = vperm.xlu0 %250, %v35
    %v252 = vpop.permute.xlu0 %251
    %v254 = vadd.f32 %v242, %v247
    %v255 = vadd.f32 %v243, %v252
    %v256 = vmax.f32 %v254, 0.0
    %v257 = vmax.f32 %v255, 0.0
    %259 = vset.pattern.permute.xlu0 0
    %260 = vperm.xlu0 %259, %v36
    %v261 = vpop.permute.xlu0 %260
    %v263 = vlaneseq
    %v264 = vshrl.u32 %v263, 7
    %v265 = vsub.s32 0, %v264
    %v266 = vrot.slane %v256, %v265
    %v267 = vmul.f32 %v261, %v266
    %268 = vset.pattern.permute.xlu0 1
    %269 = vperm.xlu0 %268, %v36
    %v270 = vpop.permute.xlu0 %269
    %v272 = vlaneseq
    %v273 = vshrl.u32 %v272, 7
    %v274 = vsub.s32 1, %v273
    %v275 = vrot.slane %v256, %v274
    %v276 = vmul.f32 %v270, %v275
    %v277 = vadd.f32 %v267, %v276
    %278 = vset.pattern.permute.xlu0 2
    %279 = vperm.xlu0 %278, %v36
    %v280 = vpop.permute.xlu0 %279
    %v282 = vlaneseq
    %v283 = vshrl.u32 %v282, 7
    %v284 = vsub.s32 2, %v283
    %v285 = vrot.slane %v256, %v284
    %v286 = vmul.f32 %v280, %v285
    %v287 = vadd.f32 %v277, %v286
    %288 = vset.pattern.permute.xlu0 3
    %289 = vperm.xlu0 %288, %v36
    %v290 = vpop.permute.xlu0 %289
    %v292 = vlaneseq
    %v293 = vshrl.u32 %v292, 7
    %v294 = vsub.s32 3, %v293
    %v295 = vrot.slane %v256, %v294
    %v296 = vmul.f32 %v290, %v295
    %v297 = vadd.f32 %v287, %v296
    %298 = vset.pattern.permute.xlu0 4
    %299 = vperm.xlu0 %298, %v36
    %v300 = vpop.permute.xlu0 %299
    %v302 = vlaneseq
    %v303 = vshrl.u32 %v302, 7
    %v304 = vsub.s32 4, %v303
    %v305 = vrot.slane %v256, %v304
    %v306 = vmul.f32 %v300, %v305
    %v307 = vadd.f32 %v297, %v306
    %308 = vset.pattern.permute.xlu0 5
    %309 = vperm.xlu0 %308, %v36
    %v310 = vpop.permute.xlu0 %309
    %v312 = vlaneseq
    %v313 = vshrl.u32 %v312, 7
    %v314 = vsub.s32 5, %v313
    %v315 = vrot.slane %v256, %v314
    %v316 = vmul.f32 %v310, %v315
    %v317 = vadd.f32 %v307, %v316
    %318 = vset.pattern.permute.xlu0 6
    %319 = vperm.xlu0 %318, %v36
    %v320 = vpop.permute.xlu0 %319
    %v322 = vlaneseq
    %v323 = vshrl.u32 %v322, 7
    %v324 = vsub.s32 6, %v323
    %v325 = vrot.slane %v256, %v324
    %v326 = vmul.f32 %v320, %v325
    %v327 = vadd.f32 %v317, %v326
    %328 = vset.pattern.permute.xlu0 7
    %329 = vperm.xlu0 %328, %v36
    %v330 = vpop.permute.xlu0 %329
    %v332 = vlaneseq
    %v333 = vshrl.u32 %v332, 7
    %v334 = vsub.s32 7, %v333
    %v335 = vrot.slane %v256, %v334
    %v336 = vmul.f32 %v330, %v335
    %v337 = vadd.f32 %v327, %v336
    %338 = vset.pattern.permute.xlu0 8
    %339 = vperm.xlu0 %338, %v36
    %v340 = vpop.permute.xlu0 %339
    %v342 = vlaneseq
    %v343 = vshrl.u32 %v342, 7
    %v344 = vsub.s32 0, %v343
    %v345 = vrot.slane %v257, %v344
    %v346 = vmul.f32 %v340, %v345
    %v347 = vadd.f32 %v337, %v346
    %349 = vset.pattern.permute.xlu0 0
    %350 = vperm.xlu0 %349, %v37
    %v351 = vpop.permute.xlu0 %350
    %v353 = vadd.f32 %v347, %v351
    %vm354 = vcmask 59392
    %355 = vst.msk [vmem:[#allocation2] sm:$0x7] %vm354, %v353
    // Predicated region
    $region30: #{tpu_custom_call.1} parent=1 // pred_check
      _
    $region31: #{tpu_custom_call.1} parent=1 // pred_check_branch
      %357 = sbr.rel (0) target = $region33
    $region32: #{tpu_custom_call.1} parent=1 // pred_region
      %s359 = ssub.s32 64, 64
      %360 = vsyncadd [#allocation3], %s359
      %s362 = sshll.u32 [#allocation2], 4
      %s363 = int_to_ptr.vmem [resolvable:$true] %s362
      %365 = dma.vmem_to_hbm [thread:$0]  %s363, 64, %s7, [#allocation3]
    $region33: #{tpu_custom_call.1} parent=1 // pred_fallthru
      _
    // Predicated region
    $region34: #{tpu_custom_call.1} parent=1 // pred_check
      _
    $region35: #{tpu_custom_call.1} parent=1 // pred_check_branch
      %367 = sbr.rel (0) target = $region37
    $region36: #{tpu_custom_call.1} parent=1 // pred_region
      %368 = dma.done [#allocation3], 64
    $region37: #{tpu_custom_call.1} parent=1 // pred_fallthru
      _
    %369 = vsyncpa [#allocation3], 1

</llo_original>
